<compile_context>
chip_gen: v7x
topology: tpu7x:2x2x1
jax: 0.10.0
libtpu: 0.0.40
codegen_flags: <defaults>
</compile_context>

<pallas_src>
import functools
import math

import jax
import jax.numpy as jnp
from jax.experimental import pallas as pl
from jax.experimental.pallas import tpu as pltpu


def _conv_mm_kernel(lhs_ref, rhs_ref, o_ref):
    """One grid step: lane-dense (tr, Kp) @ (Kp, g*Cout) -> (tr, g*Cout) store."""
    o_ref[...] = jnp.dot(
        lhs_ref[...], rhs_ref[...], preferred_element_type=jnp.float32
    ).astype(o_ref.dtype)


def _pick_row_tile(rows_total, bytes_per_row, vmem_budget=2 * 1024 * 1024,
                   min_steps=2):
    """Largest sublane-aligned divisor of rows_total that fits the VMEM budget,
    preferring >= min_steps grid steps so v7x's two TensorCores both get work."""
    cands = [t for t in range(8, rows_total + 1, 8) if rows_total % t == 0]
    if not cands:
        return rows_total                      # tiny problem: one full block
    fit = [t for t in cands if t * bytes_per_row <= vmem_budget] or [cands[0]]
    multi = [t for t in fit if rows_total // t >= min_steps]
    return max(multi) if multi else max(fit)


def conv3d_same_pallas(x_ncdhw, weight_oidhw, bias, kernel_size,
                       compute_dtype=None):
    """3D conv, stride 1, padding=(k-1)//2, as a single-matmul Pallas kernel.

    x_ncdhw:      (N, Cin, D, H, W)   -- PyTorch NCDHW convention
    weight_oidhw: (Cout, Cin, kd, kh, kw)
    bias:         (Cout,)
    compute_dtype: optional MXU operand dtype (e.g. jnp.bfloat16 on v6e/v7x);
                   accumulation is always f32.
    returns:      (N, Cout, D, H, W)
    """
    N, Cin, D, H, W = x_ncdhw.shape
    Cout = weight_oidhw.shape[0]
    k = kernel_size
    assert k % 2 == 1, "padding=(k-1)//2 only matches SAME (and the module) for odd k"
    p = (k - 1) // 2
    out_dtype = x_ncdhw.dtype

    # ------------- XLA glue: layout + im2col (pure data movement) -------------
    x_ndhwc = jnp.transpose(x_ncdhw, (0, 2, 3, 4, 1))
    x_pad = jnp.pad(x_ndhwc, ((0, 0), (p, p), (p, p), (p, p), (0, 0)))

    # (N, D, H, W, k^3, Cin): tap-major, channel-minor -> matches weight reshape.
    taps = [x_pad[:, a:a + D, b:b + H, c:c + W, :]
            for a in range(k) for b in range(k) for c in range(k)]
    num_pix = N * D * H * W
    patches = jnp.stack(taps, axis=4).reshape(num_pix, k * k * k * Cin)

    # Fold the bias into the matmul: ones column on the lhs, bias row on the rhs.
    k_eff = k * k * k * Cin + 1
    patches = jnp.concatenate(
        [patches, jnp.ones((num_pix, 1), patches.dtype)], axis=1)

    w_mat = jnp.transpose(weight_oidhw, (2, 3, 4, 1, 0)).reshape(
        k * k * k * Cin, Cout)
    rhs_small = jnp.concatenate([w_mat, bias.reshape(1, Cout)], axis=0)  # (k_eff, Cout)

    # Group g consecutive output pixels per output row so stores are g*Cout = 128
    # lanes wide (dense, unmasked).  rhs becomes block_diag(rhs_small, g); the
    # structural-zero MACs are free while the kernel is memory bound.  For very
    # large Cin*k^3 (MXU-bound regime) set g = 1 and accept Cout-wide stores.
    g = 128 // Cout if (Cout < 128 and 128 % Cout == 0) else 1
    g = math.gcd(g, num_pix)

    rows_total = num_pix // g
    k_grp = g * k_eff
    k_pad = ((k_grp + 127) // 128) * 128       # lane-dense contraction axis

    lhs = patches.reshape(rows_total, k_grp)
    lhs = jnp.pad(lhs, ((0, 0), (0, k_pad - k_grp)))
    rhs = jnp.kron(jnp.eye(g, dtype=rhs_small.dtype), rhs_small)  # (k_grp, g*Cout)
    rhs = jnp.pad(rhs, ((0, k_pad - k_grp), (0, 0)))

    if compute_dtype is not None:
        lhs = lhs.astype(compute_dtype)
        rhs = rhs.astype(compute_dtype)

    # ------------- Pallas: tiled (rows x Kp) @ (Kp x g*Cout) -------------------
    gcout = g * Cout
    itemsize = jnp.dtype(lhs.dtype).itemsize
    bytes_per_row = k_pad * itemsize + gcout * jnp.dtype(out_dtype).itemsize
    tr = _pick_row_tile(rows_total, bytes_per_row)
    grid = (rows_total // tr,)

    out_flat = pl.pallas_call(
        _conv_mm_kernel,
        out_shape=jax.ShapeDtypeStruct((rows_total, gcout), out_dtype),
        grid_spec=pltpu.PrefetchScalarGridSpec(
            num_scalar_prefetch=0,
            grid=grid,
            in_specs=[
                pl.BlockSpec((tr, k_pad), lambda i: (i, 0)),
                pl.BlockSpec((k_pad, gcout), lambda i: (0, 0)),  # resident weights
            ],
            out_specs=pl.BlockSpec((tr, gcout), lambda i: (i, 0)),
        ),
        compiler_params=pltpu.CompilerParams(
            dimension_semantics=("parallel",),
            vmem_limit_bytes=32 * 1024 * 1024,
        ),
    )(lhs, rhs)

    out = out_flat.reshape(N, D, H, W, Cout)
    return jnp.transpose(out, (0, 4, 1, 2, 3))


def pixel_shuffle3d(x, scale=2):
    """Exact replica of the PyTorch pixel_shuffle3d.forward (NCDHW)."""
    n, c, d, h, w = x.shape
    n_out = c // scale ** 3
    x = x.reshape(n, n_out, scale, scale, scale, d, h, w)
    x = jnp.transpose(x, (0, 1, 5, 2, 6, 3, 7, 4))
    return x.reshape(n, n_out, d * scale, h * scale, w * scale)


def pixel_shuffle_pack_3d(x, weight, bias, scale_factor, upsample_kernel,
                          compute_dtype=None):
    """Forward pass of PixelShufflePack3D (conv in Pallas, shuffle as XLA glue)."""
    conv_out_ch = weight.shape[0]
    # NOTE: the PyTorch module hardcodes scale=2 in pixel_shuffle3d regardless of
    # scale_factor; reproduce that exactly (requires conv channels % 2**3 == 0).
    assert conv_out_ch % 8 == 0, "conv output channels must be divisible by 2**3"
    y = conv3d_same_pallas(x, weight, bias, upsample_kernel,
                           compute_dtype=compute_dtype)
    return pixel_shuffle3d(y, scale=2)


def _reference_forward(x, weight, bias, upsample_kernel):
    """Pure-JAX reference (lax conv) for correctness checking."""
    y = jax.lax.conv_general_dilated(
        x, weight,
        window_strides=(1, 1, 1),
        padding="SAME",
        dimension_numbers=("NCDHW", "OIDHW", "NCDHW"),
    )
    y = y + bias.reshape(1, -1, 1, 1, 1)
    return pixel_shuffle3d(y, scale=2)


if __name__ == "__main__":
    in_channels = 4
    out_channels = 4
    scale_factor = 2
    upsample_kernel = 3

    N, D, H, W = 2, 8, 8, 8
    conv_out_ch = out_channels * scale_factor * scale_factor  # 16

    key = jax.random.PRNGKey(0)
    kx, kw_, kb = jax.random.split(key, 3)

    x = jax.random.normal(kx, (N, in_channels, D, H, W), dtype=jnp.float32)
    # Deterministic synthetic init (stands in for default_init_weights).
    weight = 0.1 * jax.random.normal(
        kw_, (conv_out_ch, in_channels, upsample_kernel, upsample_kernel,
              upsample_kernel), dtype=jnp.float32)
    bias = 0.01 * jax.random.normal(kb, (conv_out_ch,), dtype=jnp.float32)

    fwd = jax.jit(functools.partial(
        pixel_shuffle_pack_3d,
        scale_factor=scale_factor,
        upsample_kernel=upsample_kernel))
    out = jax.block_until_ready(fwd(x, weight, bias))

    expected_shape = (N, conv_out_ch // 8, D * 2, H * 2, W * 2)
    assert out.shape == expected_shape, (out.shape, expected_shape)

    ref = jax.block_until_ready(_reference_forward(x, weight, bias, upsample_kernel))
    max_err = float(jnp.max(jnp.abs(out - ref)))
    assert jnp.allclose(out, ref, atol=2e-4, rtol=2e-4), max_err

    print("KERNEL_OK")
</pallas_src>

<mosaic_0001>
module attributes {stable_mosaic.version = 11 : i64} {
  func.func @_conv_mm_kernel(%arg0: i32, %arg1: memref<64x896xf32, #tpu.memory_space<vmem>>, %arg2: memref<896x128xf32, #tpu.memory_space<vmem>>, %arg3: memref<64x128xf32, #tpu.memory_space<vmem>>) attributes {dimension_semantics = [#tpu.dimension_semantics<parallel>], iteration_bounds = array<i64: 2>, scalar_prefetch = 0 : i64, scratch_operands = 0 : i64, tpu.core_type = #tpu.core_type<tc>, window_params = [{transform_indices = @transform_0, window_bounds = array<i64: 64, 896>}, {pipeline_mode = #tpu.pipeline_mode<synchronous>, transform_indices = @transform_1, window_bounds = array<i64: 896, 128>}, {transform_indices = @transform_2, window_bounds = array<i64: 64, 128>}]} {
    %c0 = arith.constant 0 : index
    %c0_0 = arith.constant 0 : index
    %0 = vector.load %arg1[%c0, %c0_0] : memref<64x896xf32, #tpu.memory_space<vmem>>, vector<64x896xf32>
    %c0_1 = arith.constant 0 : index
    %c0_2 = arith.constant 0 : index
    %1 = vector.load %arg2[%c0_1, %c0_2] : memref<896x128xf32, #tpu.memory_space<vmem>>, vector<896x128xf32>
    %cst = arith.constant dense<0.000000e+00> : vector<64x128xf32>
    %2 = tpu.matmul %0, %1, %cst {dimension_numbers = #tpu.dot_dimension_numbers<[1], [0], [0], [1], [0, 0, 1, 1], [], []>} : vector<64x896xf32>, vector<896x128xf32>, vector<64x128xf32> -> vector<64x128xf32>
    %c0_3 = arith.constant 0 : index
    %c0_4 = arith.constant 0 : index
    %3 = vector.load %arg3[%c0_3, %c0_4] : memref<64x128xf32, #tpu.memory_space<vmem>>, vector<64x128xf32>
    tpu.vector_store %arg3[%c0_3, %c0_4], %2 {strides = array<i32>} : memref<64x128xf32, #tpu.memory_space<vmem>>, vector<64x128xf32>,
    return
  }
  func.func @transform_0(%arg0: i32) -> (i32, i32) {
    %c0_i32 = arith.constant 0 : i32
    %c0_i32_0 = arith.constant 0 : i32
    return %arg0, %c0_i32 : i32, i32
  }
  func.func @transform_1(%arg0: i32) -> (i32, i32) {
    %c0_i32 = arith.constant 0 : i32
    %c0_i32_0 = arith.constant 0 : i32
    %c0_i32_1 = arith.constant 0 : i32
    return %c0_i32, %c0_i32_0 : i32, i32
  }
  func.func @transform_2(%arg0: i32) -> (i32, i32) {
    %c0_i32 = arith.constant 0 : i32
    %c0_i32_0 = arith.constant 0 : i32
    return %arg0, %c0_i32 : i32, i32
  }
}

</mosaic_0001>

<llo_original>
// kernel: pixel_shuffle_pack_3d.1
$region0: #{pixel_shuffle_pack_3d.1}
  #allocation0 [shape = 'u32[]', space=smem, size = 0x4, offset = 0x4, fixed_abs, tag = 'smem constant byte address 0x4 - core index']
  #allocation1 [shape = 'u32[144,128]{1,0:T(1,128)}', space=vmem, size = 0x12000, scoped, tag = 'internal scratch']
  %s0 = inlined_call_operand.vmem [shape: f32[128,896], index: 0, kind: input, shape index: {}]
  %s1 = inlined_call_operand.vmem [shape: f32[896,128], index: 1, kind: input, shape index: {}]
  %s2 = inlined_call_operand.vmem [shape: f32[128,128], index: 2, kind: output, shape index: {}]
  %s3 = sld [smem:[#allocation0]]
  $region41: #{pixel_shuffle_pack_3d.1} parent=0
    _
  %s5 = ssub.s32 1, %s3
  %s6 = scalar_select 0, %s5, %s3
  loop: start=0, step=1, limit=4
  $region2: #{pixel_shuffle_pack_3d.1} parent=0 // loop_pre_header
    _
  $region3: #{pixel_shuffle_pack_3d.1} parent=0 // loop_header
    %s8 = sphi 0, %s12
    %p9 = scmp.ge.s32.totalorder %s8, 4
    %s18 = sphi 0, %s20
    %s21 = sphi 0, %s18
    %s22 = sphi 0, %s21
    %s38 = sphi 0, %s22
    %s42 = sphi 0, %s42
    %s44 = sphi 0, %s42
    %s45 = sphi 0, %s44
    %s59 = sphi 0, %s45
    %s65 = sphi 0, %s67
    %s68 = sphi 0, %s65
    %s69 = sphi 0, %s68
    %s85 = sphi 0, %s69
  $region4: #{pixel_shuffle_pack_3d.1} parent=0 // loop_header_branch
    %11 = sbr.rel (%p9) target = $region8
  $region5: #{pixel_shuffle_pack_3d.1} parent=0 // loop_body
    %s13 = ssub.s32 %s8, 1
    %s14 = ssub.s32 %s8, 2
    %s15 = sadd.s32 %s8, 1
    %s16 = ssub.s32 %s8, %s15
    %p17 = scmp.eq.s32.totalorder %s16, 0
    %s19 = sadd.s32 %s18, 1
    %s20 = scalar_select %p17, %s18, %s19
    %p23 = pneg %p17
    %p24 = scmp.eq.s32.totalorder %s8, 1
    %p25 = por %p23, %p24
    %p26 = scmp.ne.s32.totalorder %s18, %s21
    %p27 = scmp.eq.s32.totalorder %s8, 0
    %p28 = por %p26, %p27
    %p29 = scmp.ne.s32.totalorder %s18, %s21
    %p30 = scmp.eq.s32.totalorder %s13, 1
    %p31 = por %p29, %p30
    %p32 = scmp.ne.s32.totalorder %s21, %s22
    %p33 = scmp.eq.s32.totalorder %s13, 0
    %p34 = por %p32, %p33
    %p35 = scmp.ne.s32.totalorder %s21, %s22
    %p36 = scmp.eq.s32.totalorder %s14, 1
    %p37 = por %p35, %p36
    %p39 = scmp.ne.s32.totalorder %s22, %s38
    %p40 = scmp.eq.s32.totalorder %s14, 0
    %p41 = por %p39, %p40
    %s43 = sadd.s32 %s42, 1
    %p46 = scmp.eq.s32.totalorder %s8, 1
    %p47 = scmp.ne.s32.totalorder %s42, %s44
    %p48 = scmp.eq.s32.totalorder %s8, 0
    %p49 = por %p47, %p48
    %p50 = scmp.ne.s32.totalorder %s42, %s44
    %p51 = scmp.eq.s32.totalorder %s13, 1
    %p52 = por %p50, %p51
    %p53 = scmp.ne.s32.totalorder %s44, %s45
    %p54 = scmp.eq.s32.totalorder %s13, 0
    %p55 = por %p53, %p54
    %p56 = scmp.ne.s32.totalorder %s44, %s45
    %p57 = scmp.eq.s32.totalorder %s14, 1
    %p58 = por %p56, %p57
    %p60 = scmp.ne.s32.totalorder %s45, %s59
    %p61 = scmp.eq.s32.totalorder %s14, 0
    %p62 = por %p60, %p61
    %s63 = ssub.s32 %s8, %s15
    %p64 = scmp.eq.s32.totalorder %s63, 0
    %s66 = sadd.s32 %s65, 1
    %s67 = scalar_select %p64, %s65, %s66
    %p70 = pneg %p64
    %p71 = scmp.eq.s32.totalorder %s8, 1
    %p72 = por %p70, %p71
    %p73 = scmp.ne.s32.totalorder %s65, %s68
    %p74 = scmp.eq.s32.totalorder %s8, 0
    %p75 = por %p73, %p74
    %p76 = scmp.ne.s32.totalorder %s65, %s68
    %p77 = scmp.eq.s32.totalorder %s13, 1
    %p78 = por %p76, %p77
    %p79 = scmp.ne.s32.totalorder %s68, %s69
    %p80 = scmp.eq.s32.totalorder %s13, 0
    %p81 = por %p79, %p80
    %p82 = scmp.ne.s32.totalorder %s68, %s69
    %p83 = scmp.eq.s32.totalorder %s14, 1
    %p84 = por %p82, %p83
    %p86 = scmp.ne.s32.totalorder %s69, %s85
    %p87 = scmp.eq.s32.totalorder %s14, 0
    %p88 = por %p86, %p87
    %p89 = scmp.le.s32.totalorder 1, %s8
    %p90 = scmp.lt.s32.totalorder %s8, 3
    %p91 = pnand %p89, %p90
    %p92 = pneg %p91
    // Predicated region
    $region9: #{pixel_shuffle_pack_3d.1} parent=5 // pred_check
      _
    $region10: #{pixel_shuffle_pack_3d.1} parent=5 // pred_check_branch
      %94 = sbr.rel (%p91) target = $region12
    $region11: #{pixel_shuffle_pack_3d.1} parent=5 // pred_region
      %s95 = ssub.s32 %s8, 1
      // Predicated region
      $region13: #{pixel_shuffle_pack_3d.1} parent=11 // pred_check
        %p96 = pneg %p55
      $region14: #{pixel_shuffle_pack_3d.1} parent=11 // pred_check_branch
        %98 = sbr.rel (%p96) target = $region16
      $region15: #{pixel_shuffle_pack_3d.1} parent=11 // pred_region
        _
      $region16: #{pixel_shuffle_pack_3d.1} parent=11 // pred_fallthru
        _
    $region12: #{pixel_shuffle_pack_3d.1} parent=5 // pred_fallthru
      _
    %p99 = scmp.lt.s32.totalorder %s8, 2
    // Predicated region
    $region17: #{pixel_shuffle_pack_3d.1} parent=5 // pred_check
      %p100 = pneg %p99
    $region18: #{pixel_shuffle_pack_3d.1} parent=5 // pred_check_branch
      %102 = sbr.rel (%p100) target = $region20
    $region19: #{pixel_shuffle_pack_3d.1} parent=5 // pred_region
      // Predicated region
      $region21: #{pixel_shuffle_pack_3d.1} parent=19 // pred_check
        %p103 = pneg %p28
      $region22: #{pixel_shuffle_pack_3d.1} parent=19 // pred_check_branch
        %105 = sbr.rel (%p103) target = $region24
      $region23: #{pixel_shuffle_pack_3d.1} parent=19 // pred_region
        %s106 = smul.u32 8, %s8
        %p107 = scmp.lt.s32.totalorder %s106, 15
        %s108 = scalar_select %p107, %s106, 15
        %s109 = smul.addr %s108, 7
        %s110 = smul.addr %s109, 8
        %s111 = scalar_lea.vmem %s0, %s110
        %s112 = smul.u32 8, %s8
      $region24: #{pixel_shuffle_pack_3d.1} parent=19 // pred_fallthru
        _
    $region20: #{pixel_shuffle_pack_3d.1} parent=5 // pred_fallthru
      _
    %p113 = scmp.le.s32.totalorder 1, %s8
    %p114 = scmp.lt.s32.totalorder %s8, 3
    %p115 = pnand %p113, %p114
    %p116 = pneg %p115
    // Predicated region
    $region25: #{pixel_shuffle_pack_3d.1} parent=5 // pred_check
      _
    $region26: #{pixel_shuffle_pack_3d.1} parent=5 // pred_check_branch
      %118 = sbr.rel (%p115) target = $region28
    $region27: #{pixel_shuffle_pack_3d.1} parent=5 // pred_region
      %s119 = ssub.s32 %s8, 1
      %s120 = smul.u32 8, %s13
      %p121 = scmp.lt.s32.totalorder %s120, 15
      %s122 = scalar_select %p121, %s120, 15
      %s123 = smul.addr %s122, 7
      %s124 = smul.addr %s123, 8
      %s125 = scalar_lea.vmem %s0, %s124
      %p126 = pneg %p34
      %p127 = pneg %p31
      %p128 = pneg %p55
      %p129 = pneg %p52
      %p130 = pneg %p81
      %p131 = pneg %p78
      %s132 = smul.u32 8, %s13
      %p133 = scmp.lt.s32.totalorder %s132, 15
      %s134 = scalar_select %p133, %s132, 15
      %s135 = smul.addr %s134, 8
      %s136 = scalar_lea.vmem %s2, %s135
      %s137 = smul.u32 8, %s13
      %p138 = scmp.lt.s32.totalorder %s137, 15
      %s139 = scalar_select %p138, %s137, 15
      %s140 = smul.addr %s139, 7
      %s141 = smul.addr %s140, 8
      %s142 = scalar_lea.vmem %s0, %s141
      %s143 = smul.u32 8, %s13
      %s144 = smul.u32 8, %s13
      %p145 = scmp.lt.s32.totalorder %s144, 15
      %s146 = scalar_select %p145, %s144, 15
      %s147 = smul.addr %s146, 8
      %s148 = scalar_lea.vmem %s2, %s147
      %s149 = smul.u32 8, %s13
      %v150 = vld [vmem:[%s142] sm:$0xff]
      %v151 = vld [vmem:[%s142 + $0x8] sm:$0xff]
      %v152 = vld [vmem:[%s142 + $0x10] sm:$0xff]
      %v153 = vld [vmem:[%s142 + $0x18] sm:$0xff]
      %v154 = vld [vmem:[%s142 + $0x20] sm:$0xff]
      %v155 = vld [vmem:[%s142 + $0x28] sm:$0xff]
      %v156 = vld [vmem:[%s142 + $0x30] sm:$0xff]
      %v157 = vld [vmem:[%s142 + $0x38] sm:$0xff]
      %v158 = vld [vmem:[%s142 + $0x40] sm:$0xff]
      %v159 = vld [vmem:[%s142 + $0x48] sm:$0xff]
      %v160 = vld [vmem:[%s142 + $0x50] sm:$0xff]
      %v161 = vld [vmem:[%s142 + $0x58] sm:$0xff]
      %v162 = vld [vmem:[%s142 + $0x60] sm:$0xff]
      %v163 = vld [vmem:[%s142 + $0x68] sm:$0xff]
      %v164 = vld [vmem:[%s142 + $0x70] sm:$0xff]
      %v165 = vld [vmem:[%s142 + $0x78] sm:$0xff]
      %v166 = vld [vmem:[%s142 + $0x80] sm:$0xff]
      %v167 = vld [vmem:[%s142 + $0x88] sm:$0xff]
      %v168 = vld [vmem:[%s142 + $0x90] sm:$0xff]
      %v169 = vld [vmem:[%s142 + $0x98] sm:$0xff]
      %v170 = vld [vmem:[%s142 + $0xa0] sm:$0xff]
      %v171 = vld [vmem:[%s142 + $0xa8] sm:$0xff]
      %v172 = vld [vmem:[%s142 + $0xb0] sm:$0xff]
      %v173 = vld [vmem:[%s142 + $0xb8] sm:$0xff]
      %v174 = vld [vmem:[%s142 + $0xc0] sm:$0xff]
      %v175 = vld [vmem:[%s142 + $0xc8] sm:$0xff]
      %v176 = vld [vmem:[%s142 + $0xd0] sm:$0xff]
      %v177 = vld [vmem:[%s142 + $0xd8] sm:$0xff]
      %v178 = vld [vmem:[%s142 + $0xe0] sm:$0xff]
      %v179 = vld [vmem:[%s142 + $0xe8] sm:$0xff]
      %v180 = vld [vmem:[%s142 + $0xf0] sm:$0xff]
      %v181 = vld [vmem:[%s142 + $0xf8] sm:$0xff]
      %v182 = vld [vmem:[%s142 + $0x100] sm:$0xff]
      %v183 = vld [vmem:[%s142 + $0x108] sm:$0xff]
      %v184 = vld [vmem:[%s142 + $0x110] sm:$0xff]
      %v185 = vld [vmem:[%s142 + $0x118] sm:$0xff]
      %v186 = vld [vmem:[%s142 + $0x120] sm:$0xff]
      %v187 = vld [vmem:[%s142 + $0x128] sm:$0xff]
      %v188 = vld [vmem:[%s142 + $0x130] sm:$0xff]
      %v189 = vld [vmem:[%s142 + $0x138] sm:$0xff]
      %v190 = vld [vmem:[%s142 + $0x140] sm:$0xff]
      %v191 = vld [vmem:[%s142 + $0x148] sm:$0xff]
      %v192 = vld [vmem:[%s142 + $0x150] sm:$0xff]
      %v193 = vld [vmem:[%s142 + $0x158] sm:$0xff]
      %v194 = vld [vmem:[%s142 + $0x160] sm:$0xff]
      %v195 = vld [vmem:[%s142 + $0x168] sm:$0xff]
      %v196 = vld [vmem:[%s142 + $0x170] sm:$0xff]
      %v197 = vld [vmem:[%s142 + $0x178] sm:$0xff]
      %v198 = vld [vmem:[%s142 + $0x180] sm:$0xff]
      %v199 = vld [vmem:[%s142 + $0x188] sm:$0xff]
      %v200 = vld [vmem:[%s142 + $0x190] sm:$0xff]
      %v201 = vld [vmem:[%s142 + $0x198] sm:$0xff]
      %v202 = vld [vmem:[%s142 + $0x1a0] sm:$0xff]
      %v203 = vld [vmem:[%s142 + $0x1a8] sm:$0xff]
      %v204 = vld [vmem:[%s142 + $0x1b0] sm:$0xff]
      %v205 = vld [vmem:[%s142 + $0x1b8] sm:$0xff]
      %v206 = vld [vmem:[%s1] sm:$0xff]
      %v207 = vld [vmem:[%s1 + $0x8] sm:$0xff]
      %v208 = vld [vmem:[%s1 + $0x10] sm:$0xff]
      %v209 = vld [vmem:[%s1 + $0x18] sm:$0xff]
      %v210 = vld [vmem:[%s1 + $0x20] sm:$0xff]
      %v211 = vld [vmem:[%s1 + $0x28] sm:$0xff]
      %v212 = vld [vmem:[%s1 + $0x30] sm:$0xff]
      %v213 = vld [vmem:[%s1 + $0x38] sm:$0xff]
      %v214 = vld [vmem:[%s1 + $0x40] sm:$0xff]
      %v215 = vld [vmem:[%s1 + $0x48] sm:$0xff]
      %v216 = vld [vmem:[%s1 + $0x50] sm:$0xff]
      %v217 = vld [vmem:[%s1 + $0x58] sm:$0xff]
      %v218 = vld [vmem:[%s1 + $0x60] sm:$0xff]
      %v219 = vld [vmem:[%s1 + $0x68] sm:$0xff]
      %v220 = vld [vmem:[%s1 + $0x70] sm:$0xff]
      %v221 = vld [vmem:[%s1 + $0x78] sm:$0xff]
      %v222 = vld [vmem:[%s1 + $0x80] sm:$0xff]
      %v223 = vld [vmem:[%s1 + $0x88] sm:$0xff]
      %v224 = vld [vmem:[%s1 + $0x90] sm:$0xff]
      %v225 = vld [vmem:[%s1 + $0x98] sm:$0xff]
      %v226 = vld [vmem:[%s1 + $0xa0] sm:$0xff]
      %v227 = vld [vmem:[%s1 + $0xa8] sm:$0xff]
      %v228 = vld [vmem:[%s1 + $0xb0] sm:$0xff]
      %v229 = vld [vmem:[%s1 + $0xb8] sm:$0xff]
      %v230 = vld [vmem:[%s1 + $0xc0] sm:$0xff]
      %v231 = vld [vmem:[%s1 + $0xc8] sm:$0xff]
      %v232 = vld [vmem:[%s1 + $0xd0] sm:$0xff]
      %v233 = vld [vmem:[%s1 + $0xd8] sm:$0xff]
      %v234 = vld [vmem:[%s1 + $0xe0] sm:$0xff]
      %v235 = vld [vmem:[%s1 + $0xe8] sm:$0xff]
      %v236 = vld [vmem:[%s1 + $0xf0] sm:$0xff]
      %v237 = vld [vmem:[%s1 + $0xf8] sm:$0xff]
      %v238 = vld [vmem:[%s1 + $0x100] sm:$0xff]
      %v239 = vld [vmem:[%s1 + $0x108] sm:$0xff]
      %v240 = vld [vmem:[%s1 + $0x110] sm:$0xff]
      %v241 = vld [vmem:[%s1 + $0x118] sm:$0xff]
      %v242 = vld [vmem:[%s1 + $0x120] sm:$0xff]
      %v243 = vld [vmem:[%s1 + $0x128] sm:$0xff]
      %v244 = vld [vmem:[%s1 + $0x130] sm:$0xff]
      %v245 = vld [vmem:[%s1 + $0x138] sm:$0xff]
      %v246 = vld [vmem:[%s1 + $0x140] sm:$0xff]
      %v247 = vld [vmem:[%s1 + $0x148] sm:$0xff]
      %v248 = vld [vmem:[%s1 + $0x150] sm:$0xff]
      %v249 = vld [vmem:[%s1 + $0x158] sm:$0xff]
      %v250 = vld [vmem:[%s1 + $0x160] sm:$0xff]
      %v251 = vld [vmem:[%s1 + $0x168] sm:$0xff]
      %v252 = vld [vmem:[%s1 + $0x170] sm:$0xff]
      %v253 = vld [vmem:[%s1 + $0x178] sm:$0xff]
      %v254 = vld [vmem:[%s1 + $0x180] sm:$0xff]
      %v255 = vld [vmem:[%s1 + $0x188] sm:$0xff]
      %v256 = vld [vmem:[%s1 + $0x190] sm:$0xff]
      %v257 = vld [vmem:[%s1 + $0x198] sm:$0xff]
      %v258 = vld [vmem:[%s1 + $0x1a0] sm:$0xff]
      %v259 = vld [vmem:[%s1 + $0x1a8] sm:$0xff]
      %v260 = vld [vmem:[%s1 + $0x1b0] sm:$0xff]
      %v261 = vld [vmem:[%s1 + $0x1b8] sm:$0xff]
      %v262 = vld [vmem:[%s1 + $0x1c0] sm:$0xff]
      %v263 = vld [vmem:[%s1 + $0x1c8] sm:$0xff]
      %v264 = vld [vmem:[%s1 + $0x1d0] sm:$0xff]
      %v265 = vld [vmem:[%s1 + $0x1d8] sm:$0xff]
      %v266 = vld [vmem:[%s1 + $0x1e0] sm:$0xff]
      %v267 = vld [vmem:[%s1 + $0x1e8] sm:$0xff]
      %v268 = vld [vmem:[%s1 + $0x1f0] sm:$0xff]
      %v269 = vld [vmem:[%s1 + $0x1f8] sm:$0xff]
      %v270 = vld [vmem:[%s1 + $0x200] sm:$0xff]
      %v271 = vld [vmem:[%s1 + $0x208] sm:$0xff]
      %v272 = vld [vmem:[%s1 + $0x210] sm:$0xff]
      %v273 = vld [vmem:[%s1 + $0x218] sm:$0xff]
      %v274 = vld [vmem:[%s1 + $0x220] sm:$0xff]
      %v275 = vld [vmem:[%s1 + $0x228] sm:$0xff]
      %v276 = vld [vmem:[%s1 + $0x230] sm:$0xff]
      %v277 = vld [vmem:[%s1 + $0x238] sm:$0xff]
      %v278 = vld [vmem:[%s1 + $0x240] sm:$0xff]
      %v279 = vld [vmem:[%s1 + $0x248] sm:$0xff]
      %v280 = vld [vmem:[%s1 + $0x250] sm:$0xff]
      %v281 = vld [vmem:[%s1 + $0x258] sm:$0xff]
      %v282 = vld [vmem:[%s1 + $0x260] sm:$0xff]
      %v283 = vld [vmem:[%s1 + $0x268] sm:$0xff]
      %v284 = vld [vmem:[%s1 + $0x270] sm:$0xff]
      %v285 = vld [vmem:[%s1 + $0x278] sm:$0xff]
      %v286 = vld [vmem:[%s1 + $0x280] sm:$0xff]
      %v287 = vld [vmem:[%s1 + $0x288] sm:$0xff]
      %v288 = vld [vmem:[%s1 + $0x290] sm:$0xff]
      %v289 = vld [vmem:[%s1 + $0x298] sm:$0xff]
      %v290 = vld [vmem:[%s1 + $0x2a0] sm:$0xff]
      %v291 = vld [vmem:[%s1 + $0x2a8] sm:$0xff]
      %v292 = vld [vmem:[%s1 + $0x2b0] sm:$0xff]
      %v293 = vld [vmem:[%s1 + $0x2b8] sm:$0xff]
      %v294 = vld [vmem:[%s1 + $0x2c0] sm:$0xff]
      %v295 = vld [vmem:[%s1 + $0x2c8] sm:$0xff]
      %v296 = vld [vmem:[%s1 + $0x2d0] sm:$0xff]
      %v297 = vld [vmem:[%s1 + $0x2d8] sm:$0xff]
      %v298 = vld [vmem:[%s1 + $0x2e0] sm:$0xff]
      %v299 = vld [vmem:[%s1 + $0x2e8] sm:$0xff]
      %v300 = vld [vmem:[%s1 + $0x2f0] sm:$0xff]
      %v301 = vld [vmem:[%s1 + $0x2f8] sm:$0xff]
      %v302 = vld [vmem:[%s1 + $0x300] sm:$0xff]
      %v303 = vld [vmem:[%s1 + $0x308] sm:$0xff]
      %v304 = vld [vmem:[%s1 + $0x310] sm:$0xff]
      %v305 = vld [vmem:[%s1 + $0x318] sm:$0xff]
      %v306 = vld [vmem:[%s1 + $0x320] sm:$0xff]
      %v307 = vld [vmem:[%s1 + $0x328] sm:$0xff]
      %v308 = vld [vmem:[%s1 + $0x330] sm:$0xff]
      %v309 = vld [vmem:[%s1 + $0x338] sm:$0xff]
      %v310 = vld [vmem:[%s1 + $0x340] sm:$0xff]
      %v311 = vld [vmem:[%s1 + $0x348] sm:$0xff]
      %v312 = vld [vmem:[%s1 + $0x350] sm:$0xff]
      %v313 = vld [vmem:[%s1 + $0x358] sm:$0xff]
      %v314 = vld [vmem:[%s1 + $0x360] sm:$0xff]
      %v315 = vld [vmem:[%s1 + $0x368] sm:$0xff]
      %v316 = vld [vmem:[%s1 + $0x370] sm:$0xff]
      %v317 = vld [vmem:[%s1 + $0x378] sm:$0xff]
      %318 = vmatprep.subr.mxu0 0.0
      %319 = vmatpush1.msra.mxu0 %v206
      %320 = vmatprep.subr.mxu0 0.0
      %321 = vmatpush1.msra.mxu0 %v207
      %322 = vmatprep.subr.mxu0 0.0
      %323 = vmatpush1.msra.mxu0 %v208
      %324 = vmatprep.subr.mxu0 0.0
      %325 = vmatpush1.msra.mxu0 %v209
      %326 = vmatprep.subr.mxu0 0.0
      %327 = vmatpush1.msra.mxu0 %v210
      %328 = vmatprep.subr.mxu0 0.0
      %329 = vmatpush1.msra.mxu0 %v211
      %330 = vmatprep.subr.mxu0 0.0
      %331 = vmatpush1.msra.mxu0 %v212
      %332 = vmatprep.subr.mxu0 0.0
      %333 = vmatpush1.msra.mxu0 %v213
      %334 = vmatprep.subr.mxu0 0.0
      %335 = vmatpush1.msra.mxu0 %v214
      %336 = vmatprep.subr.mxu0 0.0
      %337 = vmatpush1.msra.mxu0 %v215
      %338 = vmatprep.subr.mxu0 0.0
      %339 = vmatpush1.msra.mxu0 %v216
      %340 = vmatprep.subr.mxu0 0.0
      %341 = vmatpush1.msra.mxu0 %v217
      %342 = vmatprep.subr.mxu0 0.0
      %343 = vmatpush1.msra.mxu0 %v218
      %344 = vmatprep.subr.mxu0 0.0
      %345 = vmatpush1.msra.mxu0 %v219
      %346 = vmatprep.subr.mxu0 0.0
      %347 = vmatpush1.msra.mxu0 %v220
      %348 = vmatprep.subr.mxu0 0.0
      %349 = vmatpush1.msra.mxu0 %v221
      %350 = vmatprep.subr.mxu0 0.0
      %351 = vmatpush1.msra.mxu0 %v222
      %352 = vmatprep.subr.mxu0 0.0
      %353 = vmatpush1.msra.mxu0 %v223
      %354 = vmatprep.subr.mxu0 0.0
      %355 = vmatpush1.msra.mxu0 %v224
      %356 = vmatprep.subr.mxu0 0.0
      %357 = vmatpush1.msra.mxu0 %v225
      %358 = vmatprep.subr.mxu0 0.0
      %359 = vmatpush1.msra.mxu0 %v226
      %360 = vmatprep.subr.mxu0 0.0
      %361 = vmatpush1.msra.mxu0 %v227
      %362 = vmatprep.subr.mxu0 0.0
      %363 = vmatpush1.msra.mxu0 %v228
      %364 = vmatprep.subr.mxu0 0.0
      %365 = vmatpush1.msra.mxu0 %v229
      %366 = vmatprep.subr.mxu0 0.0
      %367 = vmatpush1.msra.mxu0 %v230
      %368 = vmatprep.subr.mxu0 0.0
      %369 = vmatpush1.msra.mxu0 %v231
      %370 = vmatprep.subr.mxu0 0.0
      %371 = vmatpush1.msra.mxu0 %v232
      %372 = vmatprep.subr.mxu0 0.0
      %373 = vmatpush1.msra.mxu0 %v233
      %374 = vmatprep.subr.mxu0 0.0
      %375 = vmatpush1.msra.mxu0 %v234
      %376 = vmatprep.subr.mxu0 0.0
      %377 = vmatpush1.msra.mxu0 %v235
      %378 = vmatprep.subr.mxu0 0.0
      %379 = vmatpush1.msra.mxu0 %v236
      %380 = vmatprep.subr.mxu0 0.0
      %381 = vmatpush1.msra.mxu0 %v237
      %382 = vmatprep.mubr.f32.mxu0 %v151
      %383 = vmatmul.mubr.f32.gmra.mrb[0].mxu0 %v150
      %v384 = vpop.f32.mrb[0].mxu0
      %v385 = vadd.f32 0.0, %v384
      %v386 = vpop.f32.mrb[0].mxu0
      %387 = vmatprep.mubr.f32.mxu0 %v158
      %388 = vmatmul.mubr.f32.gmra.mrb[0].mxu0 %v157
      %v389 = vpop.f32.mrb[0].mxu0
      %v390 = vadd.f32 0.0, %v389
      %v391 = vpop.f32.mrb[0].mxu0
      %392 = vmatprep.mubr.f32.mxu0 %v165
      %393 = vmatmul.mubr.f32.gmra.mrb[0].mxu0 %v164
      %v394 = vpop.f32.mrb[0].mxu0
      %v395 = vadd.f32 0.0, %v394
      %v396 = vpop.f32.mrb[0].mxu0
      %397 = vmatprep.mubr.f32.mxu0 %v172
      %398 = vmatmul.mubr.f32.gmra.mrb[0].mxu0 %v171
      %v399 = vpop.f32.mrb[0].mxu0
      %v400 = vadd.f32 0.0, %v399
      %v401 = vpop.f32.mrb[0].mxu0
      %402 = vmatprep.mubr.f32.mxu0 %v179
      %403 = vmatmul.mubr.f32.gmra.mrb[0].mxu0 %v178
      %v404 = vpop.f32.mrb[0].mxu0
      %v405 = vadd.f32 0.0, %v404
      %v406 = vpop.f32.mrb[0].mxu0
      %407 = vmatprep.mubr.f32.mxu0 %v186
      %408 = vmatmul.mubr.f32.gmra.mrb[0].mxu0 %v185
      %v409 = vpop.f32.mrb[0].mxu0
      %v410 = vadd.f32 0.0, %v409
      %v411 = vpop.f32.mrb[0].mxu0
      %412 = vmatprep.mubr.f32.mxu0 %v193
      %413 = vmatmul.mubr.f32.gmra.mrb[0].mxu0 %v192
      %v414 = vpop.f32.mrb[0].mxu0
      %v415 = vadd.f32 0.0, %v414
      %v416 = vpop.f32.mrb[0].mxu0
      %417 = vmatprep.mubr.f32.mxu0 %v200
      %418 = vmatmul.mubr.f32.gmra.mrb[0].mxu0 %v199
      %v419 = vpop.f32.mrb[0].mxu0
      %v420 = vadd.f32 0.0, %v419
      %v421 = vpop.f32.mrb[0].mxu0
      %422 = vdwg.mxu0
      %423 = vmatprep.subr.mxu0 0.0
      %424 = vmatpush1.msra.mxu0 %v238
      %425 = vmatprep.subr.mxu0 0.0
      %426 = vmatpush1.msra.mxu0 %v239
      %427 = vmatprep.subr.mxu0 0.0
      %428 = vmatpush1.msra.mxu0 %v240
      %429 = vmatprep.subr.mxu0 0.0
      %430 = vmatpush1.msra.mxu0 %v241
      %431 = vmatprep.subr.mxu0 0.0
      %432 = vmatpush1.msra.mxu0 %v242
      %433 = vmatprep.subr.mxu0 0.0
      %434 = vmatpush1.msra.mxu0 %v243
      %435 = vmatprep.subr.mxu0 0.0
      %436 = vmatpush1.msra.mxu0 %v244
      %437 = vmatprep.subr.mxu0 0.0
      %438 = vmatpush1.msra.mxu0 %v245
      %439 = vmatprep.subr.mxu0 0.0
      %440 = vmatpush1.msra.mxu0 %v246
      %441 = vmatprep.subr.mxu0 0.0
      %442 = vmatpush1.msra.mxu0 %v247
      %443 = vmatprep.subr.mxu0 0.0
      %444 = vmatpush1.msra.mxu0 %v248
      %445 = vmatprep.subr.mxu0 0.0
      %446 = vmatpush1.msra.mxu0 %v249
      %447 = vmatprep.subr.mxu0 0.0
      %448 = vmatpush1.msra.mxu0 %v250
      %449 = vmatprep.subr.mxu0 0.0
      %450 = vmatpush1.msra.mxu0 %v251
      %451 = vmatprep.subr.mxu0 0.0
      %452 = vmatpush1.msra.mxu0 %v252
      %453 = vmatprep.subr.mxu0 0.0
      %454 = vmatpush1.msra.mxu0 %v253
      %455 = vmatprep.subr.mxu0 0.0
      %456 = vmatpush1.msra.mxu0 %v254
      %457 = vmatprep.subr.mxu0 0.0
      %458 = vmatpush1.msra.mxu0 %v255
      %459 = vmatprep.subr.mxu0 0.0
      %460 = vmatpush1.msra.mxu0 %v256
      %461 = vmatprep.subr.mxu0 0.0
      %462 = vmatpush1.msra.mxu0 %v257
      %463 = vmatprep.subr.mxu0 0.0
      %464 = vmatpush1.msra.mxu0 %v258
      %465 = vmatprep.subr.mxu0 0.0
      %466 = vmatpush1.msra.mxu0 %v259
      %467 = vmatprep.subr.mxu0 0.0
      %468 = vmatpush1.msra.mxu0 %v260
      %469 = vmatprep.subr.mxu0 0.0
      %470 = vmatpush1.msra.mxu0 %v261
      %471 = vmatprep.subr.mxu0 0.0
      %472 = vmatpush1.msra.mxu0 %v262
      %473 = vmatprep.subr.mxu0 0.0
      %474 = vmatpush1.msra.mxu0 %v263
      %475 = vmatprep.subr.mxu0 0.0
      %476 = vmatpush1.msra.mxu0 %v264
      %477 = vmatprep.subr.mxu0 0.0
      %478 = vmatpush1.msra.mxu0 %v265
      %479 = vmatprep.subr.mxu0 0.0
      %480 = vmatpush1.msra.mxu0 %v266
      %481 = vmatprep.subr.mxu0 0.0
      %482 = vmatpush1.msra.mxu0 %v267
      %483 = vmatprep.subr.mxu0 0.0
      %484 = vmatpush1.msra.mxu0 %v268
      %485 = vmatprep.subr.mxu0 0.0
      %486 = vmatpush1.msra.mxu0 %v269
      %487 = vmatprep.mubr.f32.mxu0 %v153
      %488 = vmatmul.mubr.f32.gmra.mrb[0].mxu0 %v152
      %v489 = vpop.f32.mrb[0].mxu0
      %v490 = vadd.f32 %v385, %v489
      %v491 = vpop.f32.mrb[0].mxu0
      %492 = vmatprep.mubr.f32.mxu0 %v160
      %493 = vmatmul.mubr.f32.gmra.mrb[0].mxu0 %v159
      %v494 = vpop.f32.mrb[0].mxu0
      %v495 = vadd.f32 %v390, %v494
      %v496 = vpop.f32.mrb[0].mxu0
      %497 = vmatprep.mubr.f32.mxu0 %v167
      %498 = vmatmul.mubr.f32.gmra.mrb[0].mxu0 %v166
      %v499 = vpop.f32.mrb[0].mxu0
      %v500 = vadd.f32 %v395, %v499
      %v501 = vpop.f32.mrb[0].mxu0
      %502 = vmatprep.mubr.f32.mxu0 %v174
      %503 = vmatmul.mubr.f32.gmra.mrb[0].mxu0 %v173
      %v504 = vpop.f32.mrb[0].mxu0
      %v505 = vadd.f32 %v400, %v504
      %v506 = vpop.f32.mrb[0].mxu0
      %507 = vmatprep.mubr.f32.mxu0 %v181
      %508 = vmatmul.mubr.f32.gmra.mrb[0].mxu0 %v180
      %v509 = vpop.f32.mrb[0].mxu0
      %v510 = vadd.f32 %v405, %v509
      %v511 = vpop.f32.mrb[0].mxu0
      %512 = vmatprep.mubr.f32.mxu0 %v188
      %513 = vmatmul.mubr.f32.gmra.mrb[0].mxu0 %v187
      %v514 = vpop.f32.mrb[0].mxu0
      %v515 = vadd.f32 %v410, %v514
      %v516 = vpop.f32.mrb[0].mxu0
      %517 = vmatprep.mubr.f32.mxu0 %v195
      %518 = vmatmul.mubr.f32.gmra.mrb[0].mxu0 %v194
      %v519 = vpop.f32.mrb[0].mxu0
      %v520 = vadd.f32 %v415, %v519
      %v521 = vpop.f32.mrb[0].mxu0
      %522 = vmatprep.mubr.f32.mxu0 %v202
      %523 = vmatmul.mubr.f32.gmra.mrb[0].mxu0 %v201
      %v524 = vpop.f32.mrb[0].mxu0
      %v525 = vadd.f32 %v420, %v524
      %v526 = vpop.f32.mrb[0].mxu0
      %527 = vdwg.mxu0
      %528 = vmatprep.subr.mxu0 0.0
      %529 = vmatpush1.msra.mxu0 %v270
      %530 = vmatprep.subr.mxu0 0.0
      %531 = vmatpush1.msra.mxu0 %v271
      %532 = vmatprep.subr.mxu0 0.0
      %533 = vmatpush1.msra.mxu0 %v272
      %534 = vmatprep.subr.mxu0 0.0
      %535 = vmatpush1.msra.mxu0 %v273
      %536 = vmatprep.subr.mxu0 0.0
      %537 = vmatpush1.msra.mxu0 %v274
      %538 = vmatprep.subr.mxu0 0.0
      %539 = vmatpush1.msra.mxu0 %v275
      %540 = vmatprep.subr.mxu0 0.0
      %541 = vmatpush1.msra.mxu0 %v276
      %542 = vmatprep.subr.mxu0 0.0
      %543 = vmatpush1.msra.mxu0 %v277
      %544 = vmatprep.subr.mxu0 0.0
      %545 = vmatpush1.msra.mxu0 %v278
      %546 = vmatprep.subr.mxu0 0.0
      %547 = vmatpush1.msra.mxu0 %v279
      %548 = vmatprep.subr.mxu0 0.0
      %549 = vmatpush1.msra.mxu0 %v280
      %550 = vmatprep.subr.mxu0 0.0
      %551 = vmatpush1.msra.mxu0 %v281
      %552 = vmatprep.subr.mxu0 0.0
      %553 = vmatpush1.msra.mxu0 %v282
      %554 = vmatprep.subr.mxu0 0.0
      %555 = vmatpush1.msra.mxu0 %v283
      %556 = vmatprep.subr.mxu0 0.0
      %557 = vmatpush1.msra.mxu0 %v284
      %558 = vmatprep.subr.mxu0 0.0
      %559 = vmatpush1.msra.mxu0 %v285
      %560 = vmatprep.subr.mxu0 0.0
      %561 = vmatpush1.msra.mxu0 %v286
      %562 = vmatprep.subr.mxu0 0.0
      %563 = vmatpush1.msra.mxu0 %v287
      %564 = vmatprep.subr.mxu0 0.0
      %565 = vmatpush1.msra.mxu0 %v288
      %566 = vmatprep.subr.mxu0 0.0
      %567 = vmatpush1.msra.mxu0 %v289
      %568 = vmatprep.subr.mxu0 0.0
      %569 = vmatpush1.msra.mxu0 %v290
      %570 = vmatprep.subr.mxu0 0.0
      %571 = vmatpush1.msra.mxu0 %v291
      %572 = vmatprep.subr.mxu0 0.0
      %573 = vmatpush1.msra.mxu0 %v292
      %574 = vmatprep.subr.mxu0 0.0
      %575 = vmatpush1.msra.mxu0 %v293
      %576 = vmatprep.subr.mxu0 0.0
      %577 = vmatpush1.msra.mxu0 %v294
      %578 = vmatprep.subr.mxu0 0.0
      %579 = vmatpush1.msra.mxu0 %v295
      %580 = vmatprep.subr.mxu0 0.0
      %581 = vmatpush1.msra.mxu0 %v296
      %582 = vmatprep.subr.mxu0 0.0
      %583 = vmatpush1.msra.mxu0 %v297
      %584 = vmatprep.subr.mxu0 0.0
      %585 = vmatpush1.msra.mxu0 %v298
      %586 = vmatprep.subr.mxu0 0.0
      %587 = vmatpush1.msra.mxu0 %v299
      %588 = vmatprep.subr.mxu0 0.0
      %589 = vmatpush1.msra.mxu0 %v300
      %590 = vmatprep.subr.mxu0 0.0
      %591 = vmatpush1.msra.mxu0 %v301
      %592 = vmatprep.mubr.f32.mxu0 %v155
      %593 = vmatmul.mubr.f32.gmra.mrb[0].mxu0 %v154
      %v594 = vpop.f32.mrb[0].mxu0
      %v595 = vadd.f32 %v490, %v594
      %v596 = vpop.f32.mrb[0].mxu0
      %597 = vmatprep.mubr.f32.mxu0 %v162
      %598 = vmatmul.mubr.f32.gmra.mrb[0].mxu0 %v161
      %v599 = vpop.f32.mrb[0].mxu0
      %v600 = vadd.f32 %v495, %v599
      %v601 = vpop.f32.mrb[0].mxu0
      %602 = vmatprep.mubr.f32.mxu0 %v169
      %603 = vmatmul.mubr.f32.gmra.mrb[0].mxu0 %v168
      %v604 = vpop.f32.mrb[0].mxu0
      %v605 = vadd.f32 %v500, %v604
      %v606 = vpop.f32.mrb[0].mxu0
      %607 = vmatprep.mubr.f32.mxu0 %v176
      %608 = vmatmul.mubr.f32.gmra.mrb[0].mxu0 %v175
      %v609 = vpop.f32.mrb[0].mxu0
      %v610 = vadd.f32 %v505, %v609
      %v611 = vpop.f32.mrb[0].mxu0
      %612 = vmatprep.mubr.f32.mxu0 %v183
      %613 = vmatmul.mubr.f32.gmra.mrb[0].mxu0 %v182
      %v614 = vpop.f32.mrb[0].mxu0
      %v615 = vadd.f32 %v510, %v614
      %v616 = vpop.f32.mrb[0].mxu0
      %617 = vmatprep.mubr.f32.mxu0 %v190
      %618 = vmatmul.mubr.f32.gmra.mrb[0].mxu0 %v189
      %v619 = vpop.f32.mrb[0].mxu0
      %v620 = vadd.f32 %v515, %v619
      %v621 = vpop.f32.mrb[0].mxu0
      %622 = vmatprep.mubr.f32.mxu0 %v197
      %623 = vmatmul.mubr.f32.gmra.mrb[0].mxu0 %v196
      %v624 = vpop.f32.mrb[0].mxu0
      %v625 = vadd.f32 %v520, %v624
      %v626 = vpop.f32.mrb[0].mxu0
      %627 = vmatprep.mubr.f32.mxu0 %v204
      %628 = vmatmul.mubr.f32.gmra.mrb[0].mxu0 %v203
      %v629 = vpop.f32.mrb[0].mxu0
      %v630 = vadd.f32 %v525, %v629
      %v631 = vpop.f32.mrb[0].mxu0
      %632 = vdwg.mxu0
      %633 = vmatprep.subr.mxu0 0.0
      %634 = vmatpush1.msra.mxu0 %v302
      %635 = vmatprep.subr.mxu0 0.0
      %636 = vmatpush1.msra.mxu0 %v303
      %637 = vmatprep.subr.mxu0 0.0
      %638 = vmatpush1.msra.mxu0 %v304
      %639 = vmatprep.subr.mxu0 0.0
      %640 = vmatpush1.msra.mxu0 %v305
      %641 = vmatprep.subr.mxu0 0.0
      %642 = vmatpush1.msra.mxu0 %v306
      %643 = vmatprep.subr.mxu0 0.0
      %644 = vmatpush1.msra.mxu0 %v307
      %645 = vmatprep.subr.mxu0 0.0
      %646 = vmatpush1.msra.mxu0 %v308
      %647 = vmatprep.subr.mxu0 0.0
      %648 = vmatpush1.msra.mxu0 %v309
      %649 = vmatprep.subr.mxu0 0.0
      %650 = vmatpush1.msra.mxu0 %v310
      %651 = vmatprep.subr.mxu0 0.0
      %652 = vmatpush1.msra.mxu0 %v311
      %653 = vmatprep.subr.mxu0 0.0
      %654 = vmatpush1.msra.mxu0 %v312
      %655 = vmatprep.subr.mxu0 0.0
      %656 = vmatpush1.msra.mxu0 %v313
      %657 = vmatprep.subr.mxu0 0.0
      %658 = vmatpush1.msra.mxu0 %v314
      %659 = vmatprep.subr.mxu0 0.0
      %660 = vmatpush1.msra.mxu0 %v315
      %661 = vmatprep.subr.mxu0 0.0
      %662 = vmatpush1.msra.mxu0 %v316
      %663 = vmatprep.subr.mxu0 0.0
      %664 = vmatpush1.msra.mxu0 %v317
      %665 = vmatprep.subr.mxu0 0.0
      %666 = vmatpush1.msra.mxu0 0.0
      %667 = vmatprep.subr.mxu0 0.0
      %668 = vmatpush1.msra.mxu0 0.0
      %669 = vmatprep.subr.mxu0 0.0
      %670 = vmatpush1.msra.mxu0 0.0
      %671 = vmatprep.subr.mxu0 0.0
      %672 = vmatpush1.msra.mxu0 0.0
      %673 = vmatprep.subr.mxu0 0.0
      %674 = vmatpush1.msra.mxu0 0.0
      %675 = vmatprep.subr.mxu0 0.0
      %676 = vmatpush1.msra.mxu0 0.0
      %677 = vmatprep.subr.mxu0 0.0
      %678 = vmatpush1.msra.mxu0 0.0
      %679 = vmatprep.subr.mxu0 0.0
      %680 = vmatpush1.msra.mxu0 0.0
      %681 = vmatprep.subr.mxu0 0.0
      %682 = vmatpush1.msra.mxu0 0.0
      %683 = vmatprep.subr.mxu0 0.0
      %684 = vmatpush1.msra.mxu0 0.0
      %685 = vmatprep.subr.mxu0 0.0
      %686 = vmatpush1.msra.mxu0 0.0
      %687 = vmatprep.subr.mxu0 0.0
      %688 = vmatpush1.msra.mxu0 0.0
      %689 = vmatprep.subr.mxu0 0.0
      %690 = vmatpush1.msra.mxu0 0.0
      %691 = vmatprep.subr.mxu0 0.0
      %692 = vmatpush1.msra.mxu0 0.0
      %693 = vmatprep.subr.mxu0 0.0
      %694 = vmatpush1.msra.mxu0 0.0
      %695 = vmatprep.subr.mxu0 0.0
      %696 = vmatpush1.msra.mxu0 0.0
      %697 = vmatprep.mubr.f32.mxu0 0.0
      %698 = vmatmul.mubr.f32.gmra.mrb[0].mxu0 %v156
      %v699 = vpop.f32.mrb[0].mxu0
      %v700 = vadd.f32 %v595, %v699
      %v701 = vpop.f32.mrb[0].mxu0
      %702 = vmatprep.mubr.f32.mxu0 0.0
      %703 = vmatmul.mubr.f32.gmra.mrb[0].mxu0 %v163
      %v704 = vpop.f32.mrb[0].mxu0
      %v705 = vadd.f32 %v600, %v704
      %v706 = vpop.f32.mrb[0].mxu0
      %707 = vmatprep.mubr.f32.mxu0 0.0
      %708 = vmatmul.mubr.f32.gmra.mrb[0].mxu0 %v170
      %v709 = vpop.f32.mrb[0].mxu0
      %v710 = vadd.f32 %v605, %v709
      %v711 = vpop.f32.mrb[0].mxu0
      %712 = vmatprep.mubr.f32.mxu0 0.0
      %713 = vmatmul.mubr.f32.gmra.mrb[0].mxu0 %v177
      %v714 = vpop.f32.mrb[0].mxu0
      %v715 = vadd.f32 %v610, %v714
      %v716 = vpop.f32.mrb[0].mxu0
      %717 = vmatprep.mubr.f32.mxu0 0.0
      %718 = vmatmul.mubr.f32.gmra.mrb[0].mxu0 %v184
      %v719 = vpop.f32.mrb[0].mxu0
      %v720 = vadd.f32 %v615, %v719
      %v721 = vpop.f32.mrb[0].mxu0
      %722 = vmatprep.mubr.f32.mxu0 0.0
      %723 = vmatmul.mubr.f32.gmra.mrb[0].mxu0 %v191
      %v724 = vpop.f32.mrb[0].mxu0
      %v725 = vadd.f32 %v620, %v724
      %v726 = vpop.f32.mrb[0].mxu0
      %727 = vmatprep.mubr.f32.mxu0 0.0
      %728 = vmatmul.mubr.f32.gmra.mrb[0].mxu0 %v198
      %v729 = vpop.f32.mrb[0].mxu0
      %v730 = vadd.f32 %v625, %v729
      %v731 = vpop.f32.mrb[0].mxu0
      %732 = vmatprep.mubr.f32.mxu0 0.0
      %733 = vmatmul.mubr.f32.gmra.mrb[0].mxu0 %v205
      %v734 = vpop.f32.mrb[0].mxu0
      %v735 = vadd.f32 %v630, %v734
      %v736 = vpop.f32.mrb[0].mxu0
      %737 = vdwg.mxu0
      %738 = vst [vmem:[%s148] sm:$0xff] %v700
      %739 = vst [vmem:[%s148 + $0x8] sm:$0xff] %v705
      %740 = vst [vmem:[%s148 + $0x10] sm:$0xff] %v710
      %741 = vst [vmem:[%s148 + $0x18] sm:$0xff] %v715
      %742 = vst [vmem:[%s148 + $0x20] sm:$0xff] %v720
      %743 = vst [vmem:[%s148 + $0x28] sm:$0xff] %v725
      %744 = vst [vmem:[%s148 + $0x30] sm:$0xff] %v730
      %745 = vst [vmem:[%s148 + $0x38] sm:$0xff] %v735
      %s746 = smul.u32 8, %s13
      %p747 = scmp.lt.s32.totalorder %s746, 15
      %s748 = scalar_select %p747, %s746, 15
      %s749 = smul.addr %s748, 8
      %s750 = scalar_lea.vmem %s2, %s749
      // Predicated region
      $region29: #{pixel_shuffle_pack_3d.1} parent=27 // pred_check
        %p751 = pneg %p78
      $region30: #{pixel_shuffle_pack_3d.1} parent=27 // pred_check_branch
        %753 = sbr.rel (%p751) target = $region32
      $region31: #{pixel_shuffle_pack_3d.1} parent=27 // pred_region
        %s754 = smul.u32 8, %s13
      $region32: #{pixel_shuffle_pack_3d.1} parent=27 // pred_fallthru
        _
    $region28: #{pixel_shuffle_pack_3d.1} parent=5 // pred_fallthru
      _
    %p755 = scmp.le.s32.totalorder 2, %s8
    // Predicated region
    $region33: #{pixel_shuffle_pack_3d.1} parent=5 // pred_check
      %p756 = pneg %p755
    $region34: #{pixel_shuffle_pack_3d.1} parent=5 // pred_check_branch
      %758 = sbr.rel (%p756) target = $region36
    $region35: #{pixel_shuffle_pack_3d.1} parent=5 // pred_region
      %s759 = ssub.s32 %s8, 2
      // Predicated region
      $region37: #{pixel_shuffle_pack_3d.1} parent=35 // pred_check
        %p760 = pneg %p84
      $region38: #{pixel_shuffle_pack_3d.1} parent=35 // pred_check_branch
        %762 = sbr.rel (%p760) target = $region40
      $region39: #{pixel_shuffle_pack_3d.1} parent=35 // pred_region
        %s763 = smul.u32 8, %s14
        %p764 = scmp.lt.s32.totalorder %s763, 15
        %s765 = scalar_select %p764, %s763, 15
        %s766 = smul.addr %s765, 8
        %s767 = scalar_lea.vmem %s2, %s766
      $region40: #{pixel_shuffle_pack_3d.1} parent=35 // pred_fallthru
        _
    $region36: #{pixel_shuffle_pack_3d.1} parent=5 // pred_fallthru
      _
  $region6: #{pixel_shuffle_pack_3d.1} parent=0 // loop_footer
    %s12 = sadd.s32 1, %s8
  $region7: #{pixel_shuffle_pack_3d.1} parent=0 // loop_footer_branch
    %7 = sbr.rel target = $region3
  $region8: #{pixel_shuffle_pack_3d.1} parent=0 // loop_exit
    _

</llo_original>
